<compile_context>
chip_gen: v7x
topology: tpu7x:2x2x1
jax: 0.10.0
libtpu: 0.0.40
codegen_flags: <defaults>
</compile_context>

<pallas_src>
import functools

import jax
import jax.numpy as jnp
from jax.experimental import pallas as pl
from jax.experimental.pallas import tpu as pltpu


def swin_embed_kernel(x_ref, w_ref, p_ref, o_ref):
    # x_ref: (TM, K) patch rows; w_ref: (K, C) projection weight (grid-invariant);
    # p_ref: (3, C) = [conv bias; LN gamma; LN beta] (grid-invariant).
    x = x_ref[...]
    w = w_ref[...]
    p = p_ref[...]
    # Linear projection (== stride-P, kernel-P Conv2d); f32 accumulation on MXU.
    y = jnp.dot(x, w, preferred_element_type=jnp.float32) + p[0:1, :]
    # LayerNorm over the embedding dim (biased variance, eps=1e-5: torch defaults).
    mean = jnp.mean(y, axis=-1, keepdims=True)
    var = jnp.mean(jnp.square(y - mean), axis=-1, keepdims=True)
    y_hat = (y - mean) * jax.lax.rsqrt(var + 1e-5)
    o_ref[...] = (y_hat * p[1:2, :] + p[2:3, :]).astype(o_ref.dtype)


def _round_up(x, m):
    return (x + m - 1) // m * m


def _pick_row_tile(m, cap=1024):
    """Largest multiple of 8 <= cap that divides m (avoids remainder padding)."""
    cap = min(cap, m)
    cap -= cap % 8
    for cand in range(cap, 7, -8):
        if m % cand == 0:
            return cand
    return 0


@functools.partial(jax.jit, static_argnames=("patch_size",))
def swin_embedding_block(x, conv_w, conv_b, ln_gamma, ln_beta, *, patch_size=4):
    """x: (N, 3, H, W) float32.  Returns (N, (H/P)*(W/P), C) like the PyTorch module."""
    P = patch_size
    N, Cin, H, W = x.shape
    C = conv_w.shape[0]
    Hp, Wp = H // P, W // P
    num_patches = Hp * Wp
    K = Cin * P * P
    M = N * num_patches

    # Patch partition: (N,Cin,H,W) -> (N,Hp,Wp,Cin,P,P) -> (M, K); K ordered
    # (channel, kh, kw) to match the flattened Conv2d weight.  allow_input_fusion
    # (below) lets XLA fold this rearrangement into the kernel's input DMA rather
    # than doing a separate HBM round trip.
    patches = x.reshape(N, Cin, Hp, P, Wp, P)
    patches = jnp.transpose(patches, (0, 2, 4, 1, 3, 5)).reshape(M, K)

    w_mat = conv_w.reshape(C, K).T                      # (K, C)
    params = jnp.stack([conv_b, ln_gamma, ln_beta], 0)  # (3, C): bias, gamma, beta

    # Big row tile to amortize per-grid-step overhead and approach the HBM
    # roofline.  At TM=1024: ~(1024*48 + 1024*96)*4*2 bytes double-buffered
    # (~1.2 MB) -> far under VMEM on every generation (v7x: 64 MiB physical).
    TM = _pick_row_tile(M, cap=1024)
    if TM == 0:
        # No 8-aligned divisor: pad rows with zeros and slice them off afterwards
        # (zero rows are numerically safe through LayerNorm: output = beta).
        TM = min(512, _round_up(M, 8))
    M_pad = _round_up(M, TM)
    if M_pad != M:
        patches = jnp.pad(patches, ((0, M_pad - M), (0, 0)))

    grid = (M_pad // TM,)

    out = pl.pallas_call(
        swin_embed_kernel,
        out_shape=jax.ShapeDtypeStruct((M_pad, C), x.dtype),
        grid_spec=pltpu.PrefetchScalarGridSpec(
            num_scalar_prefetch=0,
            grid=grid,
            in_specs=[
                pl.BlockSpec((TM, K), lambda i: (i, 0)),  # patch rows (tiled)
                pl.BlockSpec((K, C), lambda i: (0, 0)),   # projection weight (resident)
                pl.BlockSpec((3, C), lambda i: (0, 0)),   # [bias; gamma; beta] (resident)
            ],
            out_specs=pl.BlockSpec((TM, C), lambda i: (i, 0)),
        ),
        compiler_params=pltpu.CompilerParams(
            dimension_semantics=("parallel",),  # megacore-shard rows on v7x
            # Permit XLA to fuse the patch transpose/reshape producer into the
            # pallas_call operand 0 DMA (no effect if fusion is not applicable).
            allow_input_fusion=[True, False, False],
        ),
    )(patches, w_mat, params)

    if M_pad != M:
        out = out[:M]
    return out.reshape(N, num_patches, C)


if __name__ == "__main__":
    # Small, module-consistent shapes: batch=2, channels=3 (RGB), 16x16 image,
    # patch_size=4 -> 16 patches of feature dim 48, embed_dim=96.
    P = 4
    EMBED_DIM = 96
    N, Cin, H, W = 2, 3, 16, 16

    key = jax.random.PRNGKey(0)
    kx, kw, kb, kg, kbeta = jax.random.split(key, 5)

    x = jax.random.normal(kx, (N, Cin, H, W), dtype=jnp.float32)
    # Shapes match nn.Conv2d(3, 96, 4, 4) + nn.LayerNorm(96).
    conv_w = jax.random.normal(kw, (EMBED_DIM, Cin, P, P), dtype=jnp.float32) * 0.05
    conv_b = jax.random.normal(kb, (EMBED_DIM,), dtype=jnp.float32) * 0.01
    ln_gamma = 1.0 + 0.1 * jax.random.normal(kg, (EMBED_DIM,), dtype=jnp.float32)
    ln_beta = 0.1 * jax.random.normal(kbeta, (EMBED_DIM,), dtype=jnp.float32)

    out = swin_embedding_block(x, conv_w, conv_b, ln_gamma, ln_beta, patch_size=P)
    jax.block_until_ready(out)

    # Shape check + loose numerical check against a pure-JAX reference.
    assert out.shape == (N, (H // P) * (W // P), EMBED_DIM), out.shape
    ref_p = x.reshape(N, Cin, H // P, P, W // P, P)
    ref_p = jnp.transpose(ref_p, (0, 2, 4, 1, 3, 5)).reshape(N, -1, Cin * P * P)
    ref_y = ref_p @ conv_w.reshape(EMBED_DIM, -1).T + conv_b
    mu = ref_y.mean(-1, keepdims=True)
    var = ((ref_y - mu) ** 2).mean(-1, keepdims=True)
    ref = (ref_y - mu) * jax.lax.rsqrt(var + 1e-5) * ln_gamma + ln_beta
    assert jnp.max(jnp.abs(out - ref)) < 5e-2, float(jnp.max(jnp.abs(out - ref)))
    print("KERNEL_OK")
</pallas_src>

<mosaic_0001>
module attributes {stable_mosaic.version = 11 : i64} {
  func.func @swin_embed_kernel(%arg0: i32, %arg1: memref<32x48xf32, #tpu.memory_space<vmem>>, %arg2: memref<48x96xf32, #tpu.memory_space<vmem>>, %arg3: memref<3x96xf32, #tpu.memory_space<vmem>>, %arg4: memref<32x96xf32, #tpu.memory_space<vmem>>) attributes {dimension_semantics = [#tpu.dimension_semantics<parallel>], iteration_bounds = array<i64: 1>, scalar_prefetch = 0 : i64, scratch_operands = 0 : i64, tpu.core_type = #tpu.core_type<tc>, window_params = [{transform_indices = @transform_0, window_bounds = array<i64: 32, 48>}, {pipeline_mode = #tpu.pipeline_mode<synchronous>, transform_indices = @transform_1, window_bounds = array<i64: 48, 96>}, {pipeline_mode = #tpu.pipeline_mode<synchronous>, transform_indices = @transform_2, window_bounds = array<i64: 3, 96>}, {transform_indices = @transform_3, window_bounds = array<i64: 32, 96>}]} {
    %c0 = arith.constant 0 : index
    %c0_0 = arith.constant 0 : index
    %0 = vector.load %arg1[%c0, %c0_0] : memref<32x48xf32, #tpu.memory_space<vmem>>, vector<32x48xf32>
    %c0_1 = arith.constant 0 : index
    %c0_2 = arith.constant 0 : index
    %1 = vector.load %arg2[%c0_1, %c0_2] : memref<48x96xf32, #tpu.memory_space<vmem>>, vector<48x96xf32>
    %c0_3 = arith.constant 0 : index
    %c0_4 = arith.constant 0 : index
    %2 = vector.load %arg3[%c0_3, %c0_4] : memref<3x96xf32, #tpu.memory_space<vmem>>, vector<3x96xf32>
    %cst = arith.constant dense<0.000000e+00> : vector<32x96xf32>
    %3 = tpu.matmul %0, %1, %cst {dimension_numbers = #tpu.dot_dimension_numbers<[1], [0], [0], [1], [0, 0, 1, 1], [], []>} : vector<32x48xf32>, vector<48x96xf32>, vector<32x96xf32> -> vector<32x96xf32>
    %4 = vector.extract_strided_slice %2 {offsets = [0, 0], sizes = [1, 96], strides = [1, 1]} : vector<3x96xf32> to vector<1x96xf32>
    %5 = vector.broadcast %4 : vector<1x96xf32> to vector<32x96xf32>
    %6 = arith.addf %3, %5 : vector<32x96xf32>
    %cst_5 = arith.constant dense<0.000000e+00> : vector<32xf32>
    %7 = vector.multi_reduction <add>, %6, %cst_5 [1] : vector<32x96xf32> to vector<32xf32>
    %8 = vector.shape_cast %7 : vector<32xf32> to vector<32x1xf32>
    %cst_6 = arith.constant 9.600000e+01 : f32
    %9 = vector.broadcast %cst_6 : f32 to vector<32x1xf32>
    %10 = arith.divf %8, %9 : vector<32x1xf32>
    %11 = vector.broadcast %10 : vector<32x1xf32> to vector<32x96xf32>
    %12 = arith.subf %6, %11 : vector<32x96xf32>
    %13 = arith.mulf %12, %12 : vector<32x96xf32>
    %cst_7 = arith.constant dense<0.000000e+00> : vector<32xf32>
    %14 = vector.multi_reduction <add>, %13, %cst_7 [1] : vector<32x96xf32> to vector<32xf32>
    %15 = vector.shape_cast %14 : vector<32xf32> to vector<32x1xf32>
    %cst_8 = arith.constant 9.600000e+01 : f32
    %16 = vector.broadcast %cst_8 : f32 to vector<32x1xf32>
    %17 = arith.divf %15, %16 : vector<32x1xf32>
    %18 = vector.broadcast %10 : vector<32x1xf32> to vector<32x96xf32>
    %19 = arith.subf %6, %18 : vector<32x96xf32>
    %cst_9 = arith.constant 9.99999974E-6 : f32
    %20 = vector.broadcast %cst_9 : f32 to vector<32x1xf32>
    %21 = arith.addf %17, %20 : vector<32x1xf32>
    %22 = math.rsqrt %21 : vector<32x1xf32>
    %23 = vector.broadcast %22 : vector<32x1xf32> to vector<32x96xf32>
    %24 = arith.mulf %19, %23 : vector<32x96xf32>
    %25 = vector.extract_strided_slice %2 {offsets = [1, 0], sizes = [1, 96], strides = [1, 1]} : vector<3x96xf32> to vector<1x96xf32>
    %26 = vector.broadcast %25 : vector<1x96xf32> to vector<32x96xf32>
    %27 = arith.mulf %24, %26 : vector<32x96xf32>
    %28 = vector.extract_strided_slice %2 {offsets = [2, 0], sizes = [1, 96], strides = [1, 1]} : vector<3x96xf32> to vector<1x96xf32>
    %29 = vector.broadcast %28 : vector<1x96xf32> to vector<32x96xf32>
    %30 = arith.addf %27, %29 : vector<32x96xf32>
    %c0_10 = arith.constant 0 : index
    %c0_11 = arith.constant 0 : index
    %31 = vector.load %arg4[%c0_10, %c0_11] : memref<32x96xf32, #tpu.memory_space<vmem>>, vector<32x96xf32>
    tpu.vector_store %arg4[%c0_10, %c0_11], %30 {strides = array<i32>} : memref<32x96xf32, #tpu.memory_space<vmem>>, vector<32x96xf32>,
    return
  }
  func.func @transform_0(%arg0: i32) -> (i32, i32) {
    %c0_i32 = arith.constant 0 : i32
    %c0_i32_0 = arith.constant 0 : i32
    return %arg0, %c0_i32 : i32, i32
  }
  func.func @transform_1(%arg0: i32) -> (i32, i32) {
    %c0_i32 = arith.constant 0 : i32
    %c0_i32_0 = arith.constant 0 : i32
    %c0_i32_1 = arith.constant 0 : i32
    return %c0_i32, %c0_i32_0 : i32, i32
  }
  func.func @transform_2(%arg0: i32) -> (i32, i32) {
    %c0_i32 = arith.constant 0 : i32
    %c0_i32_0 = arith.constant 0 : i32
    %c0_i32_1 = arith.constant 0 : i32
    return %c0_i32, %c0_i32_0 : i32, i32
  }
  func.func @transform_3(%arg0: i32) -> (i32, i32) {
    %c0_i32 = arith.constant 0 : i32
    %c0_i32_0 = arith.constant 0 : i32
    return %arg0, %c0_i32 : i32, i32
  }
}

</mosaic_0001>

<llo_original>
// kernel: swin_embedding_block.1
$region0: #{swin_embedding_block.1}
  #allocation0 [shape = 'u32[]', space=smem, size = 0x4, offset = 0x4, fixed_abs, tag = 'smem constant byte address 0x4 - core index']
  #allocation1 [shape = 'u32[144,128]{1,0:T(1,128)}', space=vmem, size = 0x12000, scoped, tag = 'internal scratch']
  %s0 = inlined_call_operand.vmem [shape: f32[32,48], index: 0, kind: input, shape index: {}]
  %s1 = inlined_call_operand.vmem [shape: f32[48,96], index: 1, kind: input, shape index: {}]
  %s2 = inlined_call_operand.vmem [shape: f32[3,96], index: 2, kind: input, shape index: {}]
  %s3 = inlined_call_operand.hbm [shape: f32[32,96], index: 3, kind: output, shape index: {}]
  %s4 = sld [smem:[#allocation0]]
  $region22: #{swin_embedding_block.1} parent=0
    _
  %s6 = ssub.s32 1, %s4
  %s7 = scalar_select 0, %s6, %s4
  $region1: #{swin_embedding_block.1} parent=0
    #allocation2 [shape = 'u8[16384]{0}', space=vmem, size = 0x4000, scoped, tag = 'output window, operand 0, single buffered']
    #allocation3 [shape = 's32[1]{0}', space=sflag, size = 0x4, scoped, tag = 'scoped memory for swin_embedding_block.1']
    %8 = vsyncpa [#allocation3], 0
    // Predicated region
    $region2: #{swin_embedding_block.1} parent=1 // pred_check
      _
    $region3: #{swin_embedding_block.1} parent=1 // pred_check_branch
      %10 = sbr.rel (0) target = $region5
    $region4: #{swin_embedding_block.1} parent=1 // pred_region
      _
    $region5: #{swin_embedding_block.1} parent=1 // pred_fallthru
      _
    // Predicated region
    $region6: #{swin_embedding_block.1} parent=1 // pred_check
      _
    $region7: #{swin_embedding_block.1} parent=1 // pred_check_branch
      %12 = sbr.rel (0) target = $region9
    $region8: #{swin_embedding_block.1} parent=1 // pred_region
      _
    $region9: #{swin_embedding_block.1} parent=1 // pred_fallthru
      _
    // Predicated region
    $region10: #{swin_embedding_block.1} parent=1 // pred_check
      _
    $region11: #{swin_embedding_block.1} parent=1 // pred_check_branch
      %14 = sbr.rel (0) target = $region13
    $region12: #{swin_embedding_block.1} parent=1 // pred_region
      _
    $region13: #{swin_embedding_block.1} parent=1 // pred_fallthru
      _
    %v15 = vld [vmem:[%s0] sm:$0xff]
    %v16 = vld [vmem:[%s0 + $0x8] sm:$0xff]
    %v17 = vld [vmem:[%s0 + $0x10] sm:$0xff]
    %v18 = vld [vmem:[%s0 + $0x18] sm:$0xff]
    %v19 = vld [vmem:[%s1] sm:$0xff]
    %v20 = vld [vmem:[%s1 + $0x8] sm:$0xff]
    %v21 = vld [vmem:[%s1 + $0x10] sm:$0xff]
    %v22 = vld [vmem:[%s1 + $0x18] sm:$0xff]
    %v23 = vld [vmem:[%s1 + $0x20] sm:$0xff]
    %v24 = vld [vmem:[%s1 + $0x28] sm:$0xff]
    %v25 = vld [vmem:[%s2] sm:$0x7]
    %v26 = vlaneseq
    %v27 = vshrl.u32 %v26, 7
    %v28 = vsub.s32 0, %v27
    %v29 = vrot.slane %v25, %v28
    %vm30 = vcmask 392192
    %v32 = vsel %vm30, %v15, 0
    %v35 = vsel %vm30, %v16, 0
    %v38 = vsel %vm30, %v17, 0
    %v41 = vsel %vm30, %v18, 0
    %43 = vmatprep.subr.mxu0 0.0
    %44 = vmatpush1.msra.mxu0 %v19
    %45 = vmatprep.subr.mxu0 0.0
    %46 = vmatpush1.msra.mxu0 %v20
    %47 = vmatprep.subr.mxu0 0.0
    %48 = vmatpush1.msra.mxu0 %v21
    %49 = vmatprep.subr.mxu0 0.0
    %50 = vmatpush1.msra.mxu0 %v22
    %51 = vmatprep.subr.mxu0 0.0
    %52 = vmatpush1.msra.mxu0 %v23
    %53 = vmatprep.subr.mxu0 0.0
    %54 = vmatpush1.msra.mxu0 %v24
    %55 = vmatprep.subr.mxu0 0.0
    %56 = vmatpush1.msra.mxu0 0.0
    %57 = vmatprep.subr.mxu0 0.0
    %58 = vmatpush1.msra.mxu0 0.0
    %59 = vmatprep.subr.mxu0 0.0
    %60 = vmatpush1.msra.mxu0 0.0
    %61 = vmatprep.subr.mxu0 0.0
    %62 = vmatpush1.msra.mxu0 0.0
    %63 = vmatprep.subr.mxu0 0.0
    %64 = vmatpush1.msra.mxu0 0.0
    %65 = vmatprep.subr.mxu0 0.0
    %66 = vmatpush1.msra.mxu0 0.0
    %67 = vmatprep.subr.mxu0 0.0
    %68 = vmatpush1.msra.mxu0 0.0
    %69 = vmatprep.subr.mxu0 0.0
    %70 = vmatpush1.msra.mxu0 0.0
    %71 = vmatprep.subr.mxu0 0.0
    %72 = vmatpush1.msra.mxu0 0.0
    %73 = vmatprep.subr.mxu0 0.0
    %74 = vmatpush1.msra.mxu0 0.0
    %75 = vmatprep.subr.mxu0 0.0
    %76 = vmatpush1.msra.mxu0 0.0
    %77 = vmatprep.subr.mxu0 0.0
    %78 = vmatpush1.msra.mxu0 0.0
    %79 = vmatprep.subr.mxu0 0.0
    %80 = vmatpush1.msra.mxu0 0.0
    %81 = vmatprep.subr.mxu0 0.0
    %82 = vmatpush1.msra.mxu0 0.0
    %83 = vmatprep.subr.mxu0 0.0
    %84 = vmatpush1.msra.mxu0 0.0
    %85 = vmatprep.subr.mxu0 0.0
    %86 = vmatpush1.msra.mxu0 0.0
    %87 = vmatprep.subr.mxu0 0.0
    %88 = vmatpush1.msra.mxu0 0.0
    %89 = vmatprep.subr.mxu0 0.0
    %90 = vmatpush1.msra.mxu0 0.0
    %91 = vmatprep.subr.mxu0 0.0
    %92 = vmatpush1.msra.mxu0 0.0
    %93 = vmatprep.subr.mxu0 0.0
    %94 = vmatpush1.msra.mxu0 0.0
    %95 = vmatprep.subr.mxu0 0.0
    %96 = vmatpush1.msra.mxu0 0.0
    %97 = vmatprep.subr.mxu0 0.0
    %98 = vmatpush1.msra.mxu0 0.0
    %99 = vmatprep.subr.mxu0 0.0
    %100 = vmatpush1.msra.mxu0 0.0
    %101 = vmatprep.subr.mxu0 0.0
    %102 = vmatpush1.msra.mxu0 0.0
    %103 = vmatprep.subr.mxu0 0.0
    %104 = vmatpush1.msra.mxu0 0.0
    %105 = vmatprep.subr.mxu0 0.0
    %106 = vmatpush1.msra.mxu0 0.0
    %107 = vmatprep.mubr.f32.mxu0 0.0
    %108 = vmatmul.mubr.f32.gmra.mrb[0].mxu0 %v32
    %v109 = vpop.f32.mrb[0].mxu0
    %v110 = vadd.f32 %v29, %v109
    %v111 = vpop.f32.mrb[0].mxu0
    %112 = vmatprep.mubr.f32.mxu0 0.0
    %113 = vmatmul.mubr.f32.gmra.mrb[0].mxu0 %v35
    %v114 = vpop.f32.mrb[0].mxu0
    %v115 = vadd.f32 %v29, %v114
    %v116 = vpop.f32.mrb[0].mxu0
    %117 = vmatprep.mubr.f32.mxu0 0.0
    %118 = vmatmul.mubr.f32.gmra.mrb[0].mxu0 %v38
    %v119 = vpop.f32.mrb[0].mxu0
    %v120 = vadd.f32 %v29, %v119
    %v121 = vpop.f32.mrb[0].mxu0
    %122 = vmatprep.mubr.f32.mxu0 0.0
    %123 = vmatmul.mubr.f32.gmra.mrb[0].mxu0 %v41
    %v124 = vpop.f32.mrb[0].mxu0
    %v125 = vadd.f32 %v29, %v124
    %v126 = vpop.f32.mrb[0].mxu0
    %127 = vdwg.mxu0
    %vm128 = vcmask 785408
    %v129 = vsel %vm128, %v110, 0.0
    %130 = vadd.xlane.f32.xlu0 %v129
    %v131 = vpop.xlane.xlu0 %130
    %v132 = vsel %vm128, %v115, 0.0
    %133 = vadd.xlane.f32.xlu0 %v132
    %v134 = vpop.xlane.xlu0 %133
    %v135 = vsel %vm128, %v120, 0.0
    %136 = vadd.xlane.f32.xlu0 %v135
    %v137 = vpop.xlane.xlu0 %136
    %v138 = vsel %vm128, %v125, 0.0
    %139 = vadd.xlane.f32.xlu0 %v138
    %v140 = vpop.xlane.xlu0 %139
    %v141 = vrcp.pop 96.0
    %v142 = vmul.f32 %v131, %v141
    %v143 = vmul.f32 %v134, %v141
    %v144 = vmul.f32 %v137, %v141
    %v145 = vmul.f32 %v140, %v141
    %v146 = vsub.f32 %v110, %v142
    %v147 = vsub.f32 %v115, %v143
    %v148 = vsub.f32 %v120, %v144
    %v149 = vsub.f32 %v125, %v145
    %v150 = vmul.f32 %v146, %v146
    %v151 = vmul.f32 %v147, %v147
    %v152 = vmul.f32 %v148, %v148
    %v153 = vmul.f32 %v149, %v149
    %v154 = vsel %vm128, %v150, 0.0
    %155 = vadd.xlane.f32.xlu0 %v154
    %v156 = vpop.xlane.xlu0 %155
    %v157 = vsel %vm128, %v151, 0.0
    %158 = vadd.xlane.f32.xlu0 %v157
    %v159 = vpop.xlane.xlu0 %158
    %v160 = vsel %vm128, %v152, 0.0
    %161 = vadd.xlane.f32.xlu0 %v160
    %v162 = vpop.xlane.xlu0 %161
    %v163 = vsel %vm128, %v153, 0.0
    %164 = vadd.xlane.f32.xlu0 %v163
    %v165 = vpop.xlane.xlu0 %164
    %v166 = vmul.f32 %v156, %v141
    %v167 = vmul.f32 %v159, %v141
    %v168 = vmul.f32 %v162, %v141
    %v169 = vmul.f32 %v165, %v141
    %v170 = vadd.f32 %v166, 1e-05
    %v171 = vadd.f32 %v167, 1e-05
    %v172 = vadd.f32 %v168, 1e-05
    %v173 = vadd.f32 %v169, 1e-05
    %v174 = vrsqrt.pop %v170
    %v175 = vrsqrt.pop %v171
    %v176 = vrsqrt.pop %v172
    %v177 = vrsqrt.pop %v173
    %v178 = vmul.f32 %v146, %v174
    %v179 = vmul.f32 %v147, %v175
    %v180 = vmul.f32 %v148, %v176
    %v181 = vmul.f32 %v149, %v177
    %v182 = vlaneseq
    %v183 = vshrl.u32 %v182, 7
    %v184 = vsub.s32 1, %v183
    %v185 = vrot.slane %v25, %v184
    %v186 = vmul.f32 %v178, %v185
    %v187 = vmul.f32 %v179, %v185
    %v188 = vmul.f32 %v180, %v185
    %v189 = vmul.f32 %v181, %v185
    %v190 = vlaneseq
    %v191 = vshrl.u32 %v190, 7
    %v192 = vsub.s32 2, %v191
    %v193 = vrot.slane %v25, %v192
    %v194 = vadd.f32 %v186, %v193
    %v195 = vadd.f32 %v187, %v193
    %v196 = vadd.f32 %v188, %v193
    %v197 = vadd.f32 %v189, %v193
    %198 = vst.msk [vmem:[#allocation2] sm:$0xff] %vm128, %v194
    %199 = vst.msk [vmem:[#allocation2 + $0x8] sm:$0xff] %vm128, %v195
    %200 = vst.msk [vmem:[#allocation2 + $0x10] sm:$0xff] %vm128, %v196
    %201 = vst.msk [vmem:[#allocation2 + $0x18] sm:$0xff] %vm128, %v197
    // Predicated region
    $region14: #{swin_embedding_block.1} parent=1 // pred_check
      _
    $region15: #{swin_embedding_block.1} parent=1 // pred_check_branch
      %203 = sbr.rel (0) target = $region17
    $region16: #{swin_embedding_block.1} parent=1 // pred_region
      %s205 = ssub.s32 512, 512
      %206 = vsyncadd [#allocation3], %s205
      %s207 = sshll.u32 [#allocation2], 4
      %s208 = int_to_ptr.vmem [resolvable:$true] %s207
      %213 = dma.vmem_to_hbm [thread:$0]  %s208, 512, %s3, [#allocation3], 128, 128, 8
    $region17: #{swin_embedding_block.1} parent=1 // pred_fallthru
      _
    // Predicated region
    $region18: #{swin_embedding_block.1} parent=1 // pred_check
      _
    $region19: #{swin_embedding_block.1} parent=1 // pred_check_branch
      %215 = sbr.rel (0) target = $region21
    $region20: #{swin_embedding_block.1} parent=1 // pred_region
      %216 = dma.done [#allocation3], 512
    $region21: #{swin_embedding_block.1} parent=1 // pred_fallthru
      _
    %217 = vsyncpa [#allocation3], 1

</llo_original>
